<compile_context>
chip_gen: v7x
topology: tpu7x:2x2x1
jax: 0.10.0
libtpu: 0.0.40
codegen_flags: <defaults>
</compile_context>

<pallas_src>
import functools

import jax
import jax.numpy as jnp
from jax import lax
from jax.experimental import pallas as pl
from jax.experimental.pallas import tpu as pltpu

EPS = 1e-5
_LANE = 128
_MIN_LANE_TILE = 512                 # lane-tile floor (mem-bound roofline knee)
_TARGET_BLOCK_BYTES = 2 << 20        # ~2 MiB of f32 working set per block
_SMALL_BLOCK_BYTES = 512 << 10       # below this, deepen the input pipeline


def _ln_withbias_kernel(x_ref, w_ref, b_ref, o_ref):
    x = x_ref[...].astype(jnp.float32)                    # (TB, C, TL)
    inv_c = 1.0 / x.shape[1]
    # Two-pass (centered) moments: tile is VMEM-resident so the second pass is
    # essentially free and matches PyTorch's centered variance numerically.
    mu = jnp.sum(x, axis=1, keepdims=True) * inv_c        # (TB, 1, TL)
    xc = x - mu
    var = jnp.sum(xc * xc, axis=1, keepdims=True) * inv_c
    inv = lax.rsqrt(var + EPS)                            # EUP slot, ~free
    w = w_ref[...].astype(jnp.float32)                    # (1, C, 1)
    b = b_ref[...].astype(jnp.float32)                    # (1, C, 1)
    o_ref[...] = (xc * inv * w + b).astype(o_ref.dtype)


def _ln_biasfree_kernel(x_ref, w_ref, o_ref):
    x = x_ref[...].astype(jnp.float32)                    # (TB, C, TL)
    inv_c = 1.0 / x.shape[1]
    mu = jnp.sum(x, axis=1, keepdims=True) * inv_c
    xc = x - mu
    var = jnp.sum(xc * xc, axis=1, keepdims=True) * inv_c  # centered variance
    inv = lax.rsqrt(var + EPS)
    w = w_ref[...].astype(jnp.float32)
    # BiasFree semantics: scale x itself (NOT x - mu) by rsqrt(var + eps).
    o_ref[...] = (x * inv * w).astype(o_ref.dtype)


def _select_tiling(b, c, hw, itemsize, lane_tile):
    """Returns (tb, tl, n_lane_tiles) for blocks of shape (tb, c, tl)."""
    ws = max(itemsize, 4)            # size from the f32 working set (bf16-safe)
    col_bytes = c * ws               # one lane column, upcast to f32
    slab_bytes = col_bytes * hw      # one full (1, C, HW) slab, upcast to f32

    if lane_tile is not None:        # explicit override (testing / tuning)
        tl = max(_LANE, min(hw, int(lane_tile)))
        return 1, tl, pl.cdiv(hw, tl)

    if slab_bytes <= _TARGET_BLOCK_BYTES:
        # Small spatial extent: block multiple batch elements per grid step so
        # DMAs stay ~MiB-sized and per-step overhead is amortized.
        tb = min(b, max(1, _TARGET_BLOCK_BYTES // max(slab_bytes, 1)))
        return tb, hw, 1

    # Large spatial extent: largest multiple of 128 lanes <= target, with a
    # 512-lane floor.  A partial last tile is handled by masked boundary DMA.
    tl = (_TARGET_BLOCK_BYTES // col_bytes) // _LANE * _LANE
    tl = max(tl, _MIN_LANE_TILE)
    tl = min(tl, hw)
    return 1, tl, pl.cdiv(hw, tl)


@functools.partial(jax.jit, static_argnames=("ln_type", "lane_tile"))
def layer_norm(x_nchw, weight, bias=None, *, ln_type="WithBias", lane_tile=None):
    """Equivalent of LayerNorm(dim, LayerNorm_type).forward on an NCHW input."""
    b, c, h, w = x_nchw.shape
    hw = h * w
    itemsize = x_nchw.dtype.itemsize
    x3 = x_nchw.reshape(b, c, hw)      # free: contiguous collapse, no transpose

    tb, tl, n_lane_tiles = _select_tiling(b, c, hw, itemsize, lane_tile)

    # Single flattened grid axis -> always megacore-splittable on v7x.
    if n_lane_tiles == 1:
        n_steps = pl.cdiv(b, tb)
        x_index = lambda i: (i, 0, 0)
    else:
        nt = n_lane_tiles
        n_steps = b * nt
        x_index = lambda i: (i // nt, 0, i % nt)

    # Explicit, generation-aware VMEM budget: double-buffered in+out in the
    # I/O dtype plus ~3 blocks of f32 temporaries, clamped below v7x physical.
    in_block_bytes = tb * c * tl * itemsize
    f32_block_bytes = tb * c * tl * 4
    vmem_limit = 4 * in_block_bytes + 3 * f32_block_bytes + (2 << 20)
    vmem_limit = max(16 << 20, min(vmem_limit, 56 << 20))

    # Default 2-deep pipelining is within ~2% of optimal at >=1 MiB blocks;
    # only deepen when a block is forced small (e.g. manual lane_tile).
    if in_block_bytes < _SMALL_BLOCK_BYTES and n_steps >= 4:
        x_spec = pl.BlockSpec((tb, c, tl), x_index, pipeline_mode=pl.Buffered(3))
    else:
        x_spec = pl.BlockSpec((tb, c, tl), x_index)
    p_spec = pl.BlockSpec((1, c, 1), lambda i: (0, 0, 0))   # resident params
    out_spec = pl.BlockSpec((tb, c, tl), x_index)

    cparams = pltpu.CompilerParams(
        dimension_semantics=("parallel",),
        vmem_limit_bytes=vmem_limit,
    )
    n_elems = b * c * hw
    cost = pl.CostEstimate(
        flops=8 * n_elems,
        transcendentals=b * hw,
        bytes_accessed=2 * n_elems * itemsize + 2 * c * 4,
    )

    w3 = weight.reshape(1, c, 1)
    if ln_type == "BiasFree":
        y3 = pl.pallas_call(
            _ln_biasfree_kernel,
            out_shape=jax.ShapeDtypeStruct((b, c, hw), x_nchw.dtype),
            grid_spec=pltpu.PrefetchScalarGridSpec(
                num_scalar_prefetch=0,
                grid=(n_steps,),
                in_specs=[x_spec, p_spec],
                out_specs=out_spec,
            ),
            compiler_params=cparams,
            cost_estimate=cost,
        )(x3, w3)
    else:
        b3 = bias.reshape(1, c, 1)
        y3 = pl.pallas_call(
            _ln_withbias_kernel,
            out_shape=jax.ShapeDtypeStruct((b, c, hw), x_nchw.dtype),
            grid_spec=pltpu.PrefetchScalarGridSpec(
                num_scalar_prefetch=0,
                grid=(n_steps,),
                in_specs=[x_spec, p_spec, p_spec],
                out_specs=out_spec,
            ),
            compiler_params=cparams,
            cost_estimate=cost,
        )(x3, w3, b3)

    return y3.reshape(b, c, h, w)      # free reshape back to NCHW


def _reference(x_nchw, weight, bias, ln_type):
    # Pure-JAX reference of the PyTorch module (normalize over channel axis).
    x = x_nchw.astype(jnp.float32)
    c = x.shape[1]
    mu = jnp.mean(x, axis=1, keepdims=True)
    var = jnp.mean((x - mu) ** 2, axis=1, keepdims=True)
    w = weight.reshape(1, c, 1, 1).astype(jnp.float32)
    if ln_type == "BiasFree":
        y = x / jnp.sqrt(var + EPS) * w
    else:
        y = (x - mu) / jnp.sqrt(var + EPS) * w + bias.reshape(1, c, 1, 1)
    return y.astype(x_nchw.dtype)


if __name__ == "__main__":
    key = jax.random.PRNGKey(0)
    ok = True

    # (shape, lane_tile override) — the last case forces the lane-tiled path
    # with a partial edge tile and the deepened (Buffered(3)) pipeline.
    cases = [
        ((2, 32, 16, 16), None),     # batch-blocked path
        ((1, 48, 20, 24), None),     # batch-blocked, odd spatial extent
        ((2, 8, 20, 20), 128),       # forced lane tiling + masked edge tile
    ]
    for (B, C, H, W), tl in cases:
        kx, kw, kb, key = jax.random.split(key, 4)
        x = jax.random.normal(kx, (B, C, H, W), dtype=jnp.float32)
        # Non-trivial affine params to exercise weight/bias paths
        # (module init is ones/zeros; the formula is identical).
        weight = 1.0 + 0.1 * jax.random.normal(kw, (C,), dtype=jnp.float32)
        bias = 0.1 * jax.random.normal(kb, (C,), dtype=jnp.float32)

        for ln_type in ("WithBias", "BiasFree"):
            out = layer_norm(x, weight, bias, ln_type=ln_type, lane_tile=tl)
            out = jax.block_until_ready(out)
            ref = _reference(x, weight, bias, ln_type)
            err = float(jnp.max(jnp.abs(out - ref)))
            if out.shape != (B, C, H, W) or err > 1e-4:
                ok = False
                print(f"MISMATCH type={ln_type} shape={out.shape} "
                      f"case={(B, C, H, W)} max_err={err}")

    if ok:
        print("KERNEL_OK")
</pallas_src>

<mosaic_0001>
module attributes {stable_mosaic.version = 11 : i64} {
  func.func @_ln_withbias_kernel(%arg0: i32, %arg1: memref<2x32x256xf32, #tpu.memory_space<vmem>>, %arg2: memref<1x32x1xf32, #tpu.memory_space<vmem>>, %arg3: memref<1x32x1xf32, #tpu.memory_space<vmem>>, %arg4: memref<2x32x256xf32, #tpu.memory_space<vmem>>) attributes {dimension_semantics = [#tpu.dimension_semantics<parallel>], iteration_bounds = array<i64: 1>, scalar_prefetch = 0 : i64, scratch_operands = 0 : i64, tpu.core_type = #tpu.core_type<tc>, window_params = [{transform_indices = @transform_0, window_bounds = array<i64: 2, 32, 256>}, {pipeline_mode = #tpu.pipeline_mode<synchronous>, transform_indices = @transform_1, window_bounds = array<i64: 1, 32, 1>}, {pipeline_mode = #tpu.pipeline_mode<synchronous>, transform_indices = @transform_2, window_bounds = array<i64: 1, 32, 1>}, {transform_indices = @transform_3, window_bounds = array<i64: 2, 32, 256>}]} {
    %c0 = arith.constant 0 : index
    %c0_0 = arith.constant 0 : index
    %c0_1 = arith.constant 0 : index
    %0 = vector.load %arg1[%c0, %c0_0, %c0_1] : memref<2x32x256xf32, #tpu.memory_space<vmem>>, vector<2x32x256xf32>
    %cst = arith.constant dense<0.000000e+00> : vector<2x256xf32>
    %1 = vector.multi_reduction <add>, %0, %cst [1] : vector<2x32x256xf32> to vector<2x256xf32>
    %2 = vector.shape_cast %1 : vector<2x256xf32> to vector<2x1x256xf32>
    %cst_2 = arith.constant 3.125000e-02 : f32
    %3 = vector.broadcast %cst_2 : f32 to vector<2x1x256xf32>
    %4 = arith.mulf %2, %3 : vector<2x1x256xf32>
    %5 = vector.broadcast %4 : vector<2x1x256xf32> to vector<2x32x256xf32>
    %6 = arith.subf %0, %5 : vector<2x32x256xf32>
    %7 = arith.mulf %6, %6 : vector<2x32x256xf32>
    %cst_3 = arith.constant dense<0.000000e+00> : vector<2x256xf32>
    %8 = vector.multi_reduction <add>, %7, %cst_3 [1] : vector<2x32x256xf32> to vector<2x256xf32>
    %9 = vector.shape_cast %8 : vector<2x256xf32> to vector<2x1x256xf32>
    %cst_4 = arith.constant 3.125000e-02 : f32
    %10 = vector.broadcast %cst_4 : f32 to vector<2x1x256xf32>
    %11 = arith.mulf %9, %10 : vector<2x1x256xf32>
    %cst_5 = arith.constant 9.99999974E-6 : f32
    %12 = vector.broadcast %cst_5 : f32 to vector<2x1x256xf32>
    %13 = arith.addf %11, %12 : vector<2x1x256xf32>
    %14 = math.rsqrt %13 : vector<2x1x256xf32>
    %c0_6 = arith.constant 0 : index
    %c0_7 = arith.constant 0 : index
    %c0_8 = arith.constant 0 : index
    %15 = vector.load %arg2[%c0_6, %c0_7, %c0_8] : memref<1x32x1xf32, #tpu.memory_space<vmem>>, vector<1x32x1xf32>
    %c0_9 = arith.constant 0 : index
    %c0_10 = arith.constant 0 : index
    %c0_11 = arith.constant 0 : index
    %16 = vector.load %arg3[%c0_9, %c0_10, %c0_11] : memref<1x32x1xf32, #tpu.memory_space<vmem>>, vector<1x32x1xf32>
    %17 = vector.broadcast %14 : vector<2x1x256xf32> to vector<2x32x256xf32>
    %18 = arith.mulf %6, %17 : vector<2x32x256xf32>
    %19 = vector.broadcast %15 : vector<1x32x1xf32> to vector<2x32x256xf32>
    %20 = arith.mulf %18, %19 : vector<2x32x256xf32>
    %21 = vector.broadcast %16 : vector<1x32x1xf32> to vector<2x32x256xf32>
    %22 = arith.addf %20, %21 : vector<2x32x256xf32>
    %c0_12 = arith.constant 0 : index
    %c0_13 = arith.constant 0 : index
    %c0_14 = arith.constant 0 : index
    %23 = vector.load %arg4[%c0_12, %c0_13, %c0_14] : memref<2x32x256xf32, #tpu.memory_space<vmem>>, vector<2x32x256xf32>
    tpu.vector_store %arg4[%c0_12, %c0_13, %c0_14], %22 {strides = array<i32>} : memref<2x32x256xf32, #tpu.memory_space<vmem>>, vector<2x32x256xf32>,
    return
  }
  func.func @transform_0(%arg0: i32) -> (i32, i32, i32) {
    %c0_i32 = arith.constant 0 : i32
    %c0_i32_0 = arith.constant 0 : i32
    %c0_i32_1 = arith.constant 0 : i32
    return %arg0, %c0_i32, %c0_i32_0 : i32, i32, i32
  }
  func.func @transform_1(%arg0: i32) -> (i32, i32, i32) {
    %c0_i32 = arith.constant 0 : i32
    %c0_i32_0 = arith.constant 0 : i32
    %c0_i32_1 = arith.constant 0 : i32
    %c0_i32_2 = arith.constant 0 : i32
    return %c0_i32, %c0_i32_0, %c0_i32_1 : i32, i32, i32
  }
  func.func @transform_2(%arg0: i32) -> (i32, i32, i32) {
    %c0_i32 = arith.constant 0 : i32
    %c0_i32_0 = arith.constant 0 : i32
    %c0_i32_1 = arith.constant 0 : i32
    %c0_i32_2 = arith.constant 0 : i32
    return %c0_i32, %c0_i32_0, %c0_i32_1 : i32, i32, i32
  }
  func.func @transform_3(%arg0: i32) -> (i32, i32, i32) {
    %c0_i32 = arith.constant 0 : i32
    %c0_i32_0 = arith.constant 0 : i32
    %c0_i32_1 = arith.constant 0 : i32
    return %arg0, %c0_i32, %c0_i32_0 : i32, i32, i32
  }
}

</mosaic_0001>

<llo_original>
// kernel: layer_norm.1
$region0: #{layer_norm.1}
  #allocation0 [shape = 'u32[]', space=smem, size = 0x4, offset = 0x4, fixed_abs, tag = 'smem constant byte address 0x4 - core index']
  #allocation1 [shape = 'u32[144,128]{1,0:T(1,128)}', space=vmem, size = 0x12000, scoped, tag = 'internal scratch']
  %s0 = inlined_call_operand.vmem [shape: f32[2,32,256], index: 0, kind: input, shape index: {}]
  %s1 = inlined_call_operand.vmem [shape: f32[1,32,1], index: 1, kind: input, shape index: {}]
  %s2 = inlined_call_operand.vmem [shape: f32[1,32,1], index: 2, kind: input, shape index: {}]
  %s3 = inlined_call_operand.vmem [shape: f32[2,32,256], index: 3, kind: output, shape index: {}]
  %s4 = sld [smem:[#allocation0]]
  $region22: #{layer_norm.1} parent=0
    _
  %s6 = ssub.s32 1, %s4
  %s7 = scalar_select 0, %s6, %s4
  // Predicated region
  $region2: #{layer_norm.1} parent=0 // pred_check
    _
  $region3: #{layer_norm.1} parent=0 // pred_check_branch
    %9 = sbr.rel (0) target = $region5
  $region4: #{layer_norm.1} parent=0 // pred_region
    _
  $region5: #{layer_norm.1} parent=0 // pred_fallthru
    _
  // Predicated region
  $region6: #{layer_norm.1} parent=0 // pred_check
    _
  $region7: #{layer_norm.1} parent=0 // pred_check_branch
    %11 = sbr.rel (0) target = $region9
  $region8: #{layer_norm.1} parent=0 // pred_region
    _
  $region9: #{layer_norm.1} parent=0 // pred_fallthru
    _
  // Predicated region
  $region10: #{layer_norm.1} parent=0 // pred_check
    _
  $region11: #{layer_norm.1} parent=0 // pred_check_branch
    %13 = sbr.rel (0) target = $region13
  $region12: #{layer_norm.1} parent=0 // pred_region
    _
  $region13: #{layer_norm.1} parent=0 // pred_fallthru
    _
  %v14 = vld [vmem:[%s0] sm:$0xff]
  %v15 = vld [vmem:[%s0 + $0x8] sm:$0xff]
  %v16 = vld [vmem:[%s0 + $0x10] sm:$0xff]
  %v17 = vld [vmem:[%s0 + $0x18] sm:$0xff]
  %v18 = vld [vmem:[%s0 + $0x20] sm:$0xff]
  %v19 = vld [vmem:[%s0 + $0x28] sm:$0xff]
  %v20 = vld [vmem:[%s0 + $0x30] sm:$0xff]
  %v21 = vld [vmem:[%s0 + $0x38] sm:$0xff]
  %v22 = vld [vmem:[%s0 + $0x40] sm:$0xff]
  %v23 = vld [vmem:[%s0 + $0x48] sm:$0xff]
  %v24 = vld [vmem:[%s0 + $0x50] sm:$0xff]
  %v25 = vld [vmem:[%s0 + $0x58] sm:$0xff]
  %v26 = vld [vmem:[%s0 + $0x60] sm:$0xff]
  %v27 = vld [vmem:[%s0 + $0x68] sm:$0xff]
  %v28 = vld [vmem:[%s0 + $0x70] sm:$0xff]
  %v29 = vld [vmem:[%s0 + $0x78] sm:$0xff]
  %v30 = vadd.f32 %v14, %v16
  %v31 = vadd.f32 %v30, %v18
  %v32 = vadd.f32 %v31, %v20
  %v33 = vrot.slane %v32, 4
  %v34 = vadd.f32 %v32, %v33
  %v35 = vrot.slane %v34, 2
  %v36 = vadd.f32 %v34, %v35
  %v37 = vrot.slane %v36, 1
  %v38 = vadd.f32 %v36, %v37
  %v39 = vadd.f32 %v15, %v17
  %v40 = vadd.f32 %v39, %v19
  %v41 = vadd.f32 %v40, %v21
  %v42 = vrot.slane %v41, 4
  %v43 = vadd.f32 %v41, %v42
  %v44 = vrot.slane %v43, 2
  %v45 = vadd.f32 %v43, %v44
  %v46 = vrot.slane %v45, 1
  %v47 = vadd.f32 %v45, %v46
  %v48 = vadd.f32 %v22, %v24
  %v49 = vadd.f32 %v48, %v26
  %v50 = vadd.f32 %v49, %v28
  %v51 = vrot.slane %v50, 4
  %v52 = vadd.f32 %v50, %v51
  %v53 = vrot.slane %v52, 2
  %v54 = vadd.f32 %v52, %v53
  %v55 = vrot.slane %v54, 1
  %v56 = vadd.f32 %v54, %v55
  %v57 = vadd.f32 %v23, %v25
  %v58 = vadd.f32 %v57, %v27
  %v59 = vadd.f32 %v58, %v29
  %v60 = vrot.slane %v59, 4
  %v61 = vadd.f32 %v59, %v60
  %v62 = vrot.slane %v61, 2
  %v63 = vadd.f32 %v61, %v62
  %v64 = vrot.slane %v63, 1
  %v65 = vadd.f32 %v63, %v64
  %v66 = vmul.f32 %v38, 0.03125
  %v67 = vmul.f32 %v47, 0.03125
  %v68 = vmul.f32 %v56, 0.03125
  %v69 = vmul.f32 %v65, 0.03125
  %v70 = vsub.f32 %v14, %v66
  %v71 = vsub.f32 %v15, %v67
  %v72 = vsub.f32 %v16, %v66
  %v73 = vsub.f32 %v17, %v67
  %v74 = vsub.f32 %v18, %v66
  %v75 = vsub.f32 %v19, %v67
  %v76 = vsub.f32 %v20, %v66
  %v77 = vsub.f32 %v21, %v67
  %v78 = vsub.f32 %v22, %v68
  %v79 = vsub.f32 %v23, %v69
  %v80 = vsub.f32 %v24, %v68
  %v81 = vsub.f32 %v25, %v69
  %v82 = vsub.f32 %v26, %v68
  %v83 = vsub.f32 %v27, %v69
  %v84 = vsub.f32 %v28, %v68
  %v85 = vsub.f32 %v29, %v69
  %v86 = vmul.f32 %v70, %v70
  %v87 = vmul.f32 %v71, %v71
  %v88 = vmul.f32 %v72, %v72
  %v89 = vmul.f32 %v73, %v73
  %v90 = vmul.f32 %v74, %v74
  %v91 = vmul.f32 %v75, %v75
  %v92 = vmul.f32 %v76, %v76
  %v93 = vmul.f32 %v77, %v77
  %v94 = vmul.f32 %v78, %v78
  %v95 = vmul.f32 %v79, %v79
  %v96 = vmul.f32 %v80, %v80
  %v97 = vmul.f32 %v81, %v81
  %v98 = vmul.f32 %v82, %v82
  %v99 = vmul.f32 %v83, %v83
  %v100 = vmul.f32 %v84, %v84
  %v101 = vmul.f32 %v85, %v85
  %v102 = vadd.f32 %v86, %v88
  %v103 = vadd.f32 %v102, %v90
  %v104 = vadd.f32 %v103, %v92
  %v105 = vrot.slane %v104, 4
  %v106 = vadd.f32 %v104, %v105
  %v107 = vrot.slane %v106, 2
  %v108 = vadd.f32 %v106, %v107
  %v109 = vrot.slane %v108, 1
  %v110 = vadd.f32 %v108, %v109
  %v111 = vadd.f32 %v87, %v89
  %v112 = vadd.f32 %v111, %v91
  %v113 = vadd.f32 %v112, %v93
  %v114 = vrot.slane %v113, 4
  %v115 = vadd.f32 %v113, %v114
  %v116 = vrot.slane %v115, 2
  %v117 = vadd.f32 %v115, %v116
  %v118 = vrot.slane %v117, 1
  %v119 = vadd.f32 %v117, %v118
  %v120 = vadd.f32 %v94, %v96
  %v121 = vadd.f32 %v120, %v98
  %v122 = vadd.f32 %v121, %v100
  %v123 = vrot.slane %v122, 4
  %v124 = vadd.f32 %v122, %v123
  %v125 = vrot.slane %v124, 2
  %v126 = vadd.f32 %v124, %v125
  %v127 = vrot.slane %v126, 1
  %v128 = vadd.f32 %v126, %v127
  %v129 = vadd.f32 %v95, %v97
  %v130 = vadd.f32 %v129, %v99
  %v131 = vadd.f32 %v130, %v101
  %v132 = vrot.slane %v131, 4
  %v133 = vadd.f32 %v131, %v132
  %v134 = vrot.slane %v133, 2
  %v135 = vadd.f32 %v133, %v134
  %v136 = vrot.slane %v135, 1
  %v137 = vadd.f32 %v135, %v136
  %v138 = vmul.f32 %v110, 0.03125
  %v139 = vmul.f32 %v119, 0.03125
  %v140 = vmul.f32 %v128, 0.03125
  %v141 = vmul.f32 %v137, 0.03125
  %v142 = vadd.f32 %v138, 1e-05
  %v143 = vadd.f32 %v139, 1e-05
  %v144 = vadd.f32 %v140, 1e-05
  %v145 = vadd.f32 %v141, 1e-05
  %v146 = vrsqrt.pop %v142
  %v147 = vrsqrt.pop %v143
  %v148 = vrsqrt.pop %v144
  %v149 = vrsqrt.pop %v145
  %v150 = vld [vmem:[%s1] sm:$0xff]
  %v151 = vld [vmem:[%s1 + $0x8] sm:$0xff]
  %v152 = vld [vmem:[%s1 + $0x10] sm:$0xff]
  %v153 = vld [vmem:[%s1 + $0x18] sm:$0xff]
  %v154 = vld [vmem:[%s2] sm:$0xff]
  %v155 = vld [vmem:[%s2 + $0x8] sm:$0xff]
  %v156 = vld [vmem:[%s2 + $0x10] sm:$0xff]
  %v157 = vld [vmem:[%s2 + $0x18] sm:$0xff]
  %v158 = vmul.f32 %v70, %v146
  %v159 = vmul.f32 %v71, %v147
  %v160 = vmul.f32 %v72, %v146
  %v161 = vmul.f32 %v73, %v147
  %v162 = vmul.f32 %v74, %v146
  %v163 = vmul.f32 %v75, %v147
  %v164 = vmul.f32 %v76, %v146
  %v165 = vmul.f32 %v77, %v147
  %v166 = vmul.f32 %v78, %v148
  %v167 = vmul.f32 %v79, %v149
  %v168 = vmul.f32 %v80, %v148
  %v169 = vmul.f32 %v81, %v149
  %v170 = vmul.f32 %v82, %v148
  %v171 = vmul.f32 %v83, %v149
  %v172 = vmul.f32 %v84, %v148
  %v173 = vmul.f32 %v85, %v149
  %175 = vset.pattern.permute.xlu0 0
  %176 = vperm.xlu0 %175, %v150
  %v177 = vpop.permute.xlu0 %176
  %180 = vset.pattern.permute.xlu0 0
  %181 = vperm.xlu0 %180, %v151
  %v182 = vpop.permute.xlu0 %181
  %185 = vset.pattern.permute.xlu0 0
  %186 = vperm.xlu0 %185, %v152
  %v187 = vpop.permute.xlu0 %186
  %190 = vset.pattern.permute.xlu0 0
  %191 = vperm.xlu0 %190, %v153
  %v192 = vpop.permute.xlu0 %191
  %v194 = vmul.f32 %v158, %v177
  %v195 = vmul.f32 %v159, %v177
  %v196 = vmul.f32 %v160, %v182
  %v197 = vmul.f32 %v161, %v182
  %v198 = vmul.f32 %v162, %v187
  %v199 = vmul.f32 %v163, %v187
  %v200 = vmul.f32 %v164, %v192
  %v201 = vmul.f32 %v165, %v192
  %v202 = vmul.f32 %v166, %v177
  %v203 = vmul.f32 %v167, %v177
  %v204 = vmul.f32 %v168, %v182
  %v205 = vmul.f32 %v169, %v182
  %v206 = vmul.f32 %v170, %v187
  %v207 = vmul.f32 %v171, %v187
  %v208 = vmul.f32 %v172, %v192
  %v209 = vmul.f32 %v173, %v192
  %211 = vset.pattern.permute.xlu0 0
  %212 = vperm.xlu0 %211, %v154
  %v213 = vpop.permute.xlu0 %212
  %216 = vset.pattern.permute.xlu0 0
  %217 = vperm.xlu0 %216, %v155
  %v218 = vpop.permute.xlu0 %217
  %221 = vset.pattern.permute.xlu0 0
  %222 = vperm.xlu0 %221, %v156
  %v223 = vpop.permute.xlu0 %222
  %226 = vset.pattern.permute.xlu0 0
  %227 = vperm.xlu0 %226, %v157
  %v228 = vpop.permute.xlu0 %227
  %v230 = vadd.f32 %v194, %v213
  %v231 = vadd.f32 %v195, %v213
  %v232 = vadd.f32 %v196, %v218
  %v233 = vadd.f32 %v197, %v218
  %v234 = vadd.f32 %v198, %v223
  %v235 = vadd.f32 %v199, %v223
  %v236 = vadd.f32 %v200, %v228
  %v237 = vadd.f32 %v201, %v228
  %v238 = vadd.f32 %v202, %v213
  %v239 = vadd.f32 %v203, %v213
  %v240 = vadd.f32 %v204, %v218
  %v241 = vadd.f32 %v205, %v218
  %v242 = vadd.f32 %v206, %v223
  %v243 = vadd.f32 %v207, %v223
  %v244 = vadd.f32 %v208, %v228
  %v245 = vadd.f32 %v209, %v228
  %246 = vst [vmem:[%s3] sm:$0xff] %v230
  %247 = vst [vmem:[%s3 + $0x8] sm:$0xff] %v231
  %248 = vst [vmem:[%s3 + $0x10] sm:$0xff] %v232
  %249 = vst [vmem:[%s3 + $0x18] sm:$0xff] %v233
  %250 = vst [vmem:[%s3 + $0x20] sm:$0xff] %v234
  %251 = vst [vmem:[%s3 + $0x28] sm:$0xff] %v235
  %252 = vst [vmem:[%s3 + $0x30] sm:$0xff] %v236
  %253 = vst [vmem:[%s3 + $0x38] sm:$0xff] %v237
  %254 = vst [vmem:[%s3 + $0x40] sm:$0xff] %v238
  %255 = vst [vmem:[%s3 + $0x48] sm:$0xff] %v239
  %256 = vst [vmem:[%s3 + $0x50] sm:$0xff] %v240
  %257 = vst [vmem:[%s3 + $0x58] sm:$0xff] %v241
  %258 = vst [vmem:[%s3 + $0x60] sm:$0xff] %v242
  %259 = vst [vmem:[%s3 + $0x68] sm:$0xff] %v243
  %260 = vst [vmem:[%s3 + $0x70] sm:$0xff] %v244
  %261 = vst [vmem:[%s3 + $0x78] sm:$0xff] %v245
  // Predicated region
  $region14: #{layer_norm.1} parent=0 // pred_check
    _
  $region15: #{layer_norm.1} parent=0 // pred_check_branch
    %263 = sbr.rel (0) target = $region17
  $region16: #{layer_norm.1} parent=0 // pred_region
    _
  $region17: #{layer_norm.1} parent=0 // pred_fallthru
    _
  // Predicated region
  $region18: #{layer_norm.1} parent=0 // pred_check
    _
  $region19: #{layer_norm.1} parent=0 // pred_check_branch
    %265 = sbr.rel (0) target = $region21
  $region20: #{layer_norm.1} parent=0 // pred_region
    _
  $region21: #{layer_norm.1} parent=0 // pred_fallthru
    _

</llo_original>
